<compile_context>
chip_gen: v6e
topology: v6e:2x2x1
jax: 0.10.0
libtpu: 0.0.40
codegen_flags: <defaults>
</compile_context>

<pallas_src>
import numpy as np
import jax
import jax.numpy as jnp
from jax.experimental import pallas as pl
from jax.experimental.pallas import tpu as pltpu


def _round_up(x: int, m: int) -> int:
    return ((x + m - 1) // m) * m


def encoder_kernel(w_ref, f_ref, out_ref):
    # w_ref:   [N, L]   conv weight (channel-major, tap-minor); constant index
    #                   map -> stays VMEM resident across the grid.
    # f_ref:   [L, tk]  transposed frames for this (frame-block, batch) tile.
    # out_ref: [N, tk]  NCK-layout output block: N in sublanes, tk (multiple of
    #                   128) in lanes -> unmasked, lane-dense stores.
    acc = jnp.dot(w_ref[...], f_ref[...], preferred_element_type=jnp.float32)
    out_ref[...] = jnp.maximum(acc, 0.0).astype(out_ref.dtype)


def encoder_forward(mixture: jax.Array, conv_weight: jax.Array, L: int,
                    block_k: int = 1024, out_dtype=None) -> jax.Array:
    """mixture: [M, T]; conv_weight: [N, 1, L] (PyTorch Conv1d layout).

    Returns mixture_w: [M, N, K] with K = (T - L) // (L // 2) + 1.
    """
    assert L % 2 == 0, "Conv-TasNet encoder uses even L (stride = L//2)"
    M, T = mixture.shape
    N = conv_weight.shape[0]
    half = L // 2
    K = (T - L) // half + 1
    assert K >= 1, "signal too short for one frame"
    if out_dtype is None:
        out_dtype = mixture.dtype   # f32 matches the PyTorch module's output

    # Frame-block tiling: split K as evenly as possible into nb blocks and
    # round the block to 128 lanes (keeps output stores unmasked while
    # minimising padded columns that get sliced off afterwards).
    nb = -(-K // block_k)                       # number of frame blocks
    tk = _round_up(-(-K // nb), 128)            # frames per block (lane dim)
    Kp = tk * nb                                # padded frame count

    # Build transposed frames [M, L, Kp] with frames_t[m, l, k] = mixture[m, k*half + l].
    # Strided frames are assembled from the two half-frame views (cheap XLA
    # reshape/transpose on the small input; padded frames are zero).
    T_valid = (K + 1) * half                    # samples the conv consumes
    T_need = (Kp + 1) * half
    mix = mixture[:, :T_valid]
    if T_need > T_valid:
        mix = jnp.pad(mix, ((0, 0), (0, T_need - T_valid)))
    halves = mix.reshape(M, Kp + 1, half)
    a_t = jnp.transpose(halves[:, :Kp, :], (0, 2, 1))   # taps 0 .. half-1   [M, half, Kp]
    b_t = jnp.transpose(halves[:, 1:, :], (0, 2, 1))    # taps half .. L-1   [M, half, Kp]
    frames_t = jnp.concatenate([a_t, b_t], axis=1).astype(jnp.bfloat16)  # [M, L, Kp]

    # Conv weight [N, 1, L] -> [N, L], bf16 (MXU-native; accumulation stays f32).
    w = conv_weight[:, 0, :].astype(jnp.bfloat16)        # [N, L]

    # Weight spec uses a constant index map so it is fetched once and stays
    # resident (it is tiny: N*L bf16).
    grid = (nb, M)   # frame-block axis first -> megacore sharding even at M == 1
    out_p = pl.pallas_call(
        encoder_kernel,
        out_shape=jax.ShapeDtypeStruct((M, N, Kp), out_dtype),
        grid=grid,
        in_specs=[
            pl.BlockSpec((N, L), lambda j, m: (0, 0)),           # resident weight
            pl.BlockSpec((None, L, tk), lambda j, m: (m, 0, j)),  # frames^T tile
        ],
        out_specs=pl.BlockSpec((None, N, tk), lambda j, m: (m, 0, j)),
        compiler_params=pltpu.CompilerParams(
            dimension_semantics=("parallel", "parallel")),
        cost_estimate=pl.CostEstimate(
            flops=2 * M * Kp * L * N,
            transcendentals=0,
            bytes_accessed=2 * (M * L * Kp + N * L)
                           + jnp.dtype(out_dtype).itemsize * M * N * Kp),
    )(w, frames_t)

    # Drop the (zero) frame padding; output is already in PyTorch's NCK layout.
    return out_p if Kp == K else out_p[:, :, :K]


def encoder_reference(mixture, conv_weight, L):
    """Pure-JAX f32 reference: strided 1-D conv + relu."""
    M, T = mixture.shape
    stride = L // 2
    K = (T - L) // stride + 1
    w = conv_weight[:, 0, :]                                           # [N, L]
    idx = jnp.arange(K)[:, None] * stride + jnp.arange(L)[None, :]     # [K, L]
    frames = mixture[:, idx]                                           # [M, K, L]
    out = jnp.einsum("mkl,nl->mnk", frames, w)
    return jax.nn.relu(out)


if __name__ == "__main__":
    # Small shapes consistent with the module: batch M=2, samples T=64,
    # filter length L=8, number of basis signals N=32 -> K = (T-L)/(L/2)+1 = 15.
    M, T, L, N = 2, 64, 8, 32

    key = jax.random.PRNGKey(0)
    k_mix, k_w = jax.random.split(key)
    mixture = jax.random.normal(k_mix, (M, T), dtype=jnp.float32)
    # Deterministic synthetic Conv1d weight, PyTorch layout [out_ch, in_ch, L].
    conv_weight = jax.random.normal(k_w, (N, 1, L), dtype=jnp.float32) * 0.1

    out = encoder_forward(mixture, conv_weight, L)
    out = jax.block_until_ready(out)

    ref = encoder_reference(mixture, conv_weight, L)
    K = (T - L) // (L // 2) + 1
    assert out.shape == (M, N, K), out.shape
    # bf16 operands with f32 accumulation -> ~1e-3 relative error vs f32 reference.
    np.testing.assert_allclose(np.asarray(out, dtype=np.float32), np.asarray(ref),
                               rtol=2e-2, atol=2e-2)

    print("KERNEL_OK")
</pallas_src>

<mosaic_0001>
module attributes {stable_mosaic.version = 11 : i64} {
  func.func @encoder_kernel(%arg0: i32, %arg1: i32, %arg2: memref<32x8xbf16, #tpu.memory_space<vmem>>, %arg3: memref<1x8x128xbf16, #tpu.memory_space<vmem>>, %arg4: memref<1x32x128xf32, #tpu.memory_space<vmem>>) attributes {dimension_semantics = [#tpu.dimension_semantics<parallel>, #tpu.dimension_semantics<parallel>], iteration_bounds = array<i64: 1, 2>, scalar_prefetch = 0 : i64, scratch_operands = 0 : i64, tpu.core_type = #tpu.core_type<tc>, window_params = [{pipeline_mode = #tpu.pipeline_mode<synchronous>, transform_indices = @transform_0, window_bounds = array<i64: 32, 8>}, {transform_indices = @transform_1, window_bounds = array<i64: 1, 8, 128>}, {transform_indices = @transform_2, window_bounds = array<i64: 1, 32, 128>}]} {
    %c0 = arith.constant 0 : index
    %c0_0 = arith.constant 0 : index
    %0 = vector.load %arg2[%c0, %c0_0] : memref<32x8xbf16, #tpu.memory_space<vmem>>, vector<32x8xbf16>
    %c0_1 = arith.constant 0 : index
    %c0_2 = arith.constant 0 : index
    %c0_3 = arith.constant 0 : index
    %1 = vector.load %arg3[%c0_1, %c0_2, %c0_3] : memref<1x8x128xbf16, #tpu.memory_space<vmem>>, vector<1x8x128xbf16>
    %2 = vector.shape_cast %1 : vector<1x8x128xbf16> to vector<8x128xbf16>
    %cst = arith.constant dense<0.000000e+00> : vector<32x128xf32>
    %3 = tpu.matmul %0, %2, %cst {dimension_numbers = #tpu.dot_dimension_numbers<[1], [0], [0], [1], [0, 0, 1, 1], [], []>} : vector<32x8xbf16>, vector<8x128xbf16>, vector<32x128xf32> -> vector<32x128xf32>
    %cst_4 = arith.constant 0.000000e+00 : f32
    %4 = vector.broadcast %cst_4 : f32 to vector<32x128xf32>
    %5 = arith.maximumf %3, %4 : vector<32x128xf32>
    %c0_5 = arith.constant 0 : index
    %c0_6 = arith.constant 0 : index
    %c0_7 = arith.constant 0 : index
    %6 = vector.load %arg4[%c0_5, %c0_6, %c0_7] : memref<1x32x128xf32, #tpu.memory_space<vmem>>, vector<1x32x128xf32>
    %7 = vector.shape_cast %6 : vector<1x32x128xf32> to vector<32x128xf32>
    %8 = vector.shape_cast %5 : vector<32x128xf32> to vector<1x32x128xf32>
    tpu.vector_store %arg4[%c0_5, %c0_6, %c0_7], %8 {strides = array<i32>} : memref<1x32x128xf32, #tpu.memory_space<vmem>>, vector<1x32x128xf32>,
    return
  }
  func.func @transform_0(%arg0: i32, %arg1: i32) -> (i32, i32) {
    %c0_i32 = arith.constant 0 : i32
    %c0_i32_0 = arith.constant 0 : i32
    %c0_i32_1 = arith.constant 0 : i32
    return %c0_i32, %c0_i32_0 : i32, i32
  }
  func.func @transform_1(%arg0: i32, %arg1: i32) -> (i32, i32, i32) {
    %c0_i32 = arith.constant 0 : i32
    %c0_i32_0 = arith.constant 0 : i32
    return %arg1, %c0_i32, %arg0 : i32, i32, i32
  }
  func.func @transform_2(%arg0: i32, %arg1: i32) -> (i32, i32, i32) {
    %c0_i32 = arith.constant 0 : i32
    %c0_i32_0 = arith.constant 0 : i32
    return %arg1, %c0_i32, %arg0 : i32, i32, i32
  }
}

</mosaic_0001>

<llo_original>
// kernel: tpu_custom_call.1
$region0: #{tpu_custom_call.1}
  #allocation0 [shape = 'u32[]', space=smem, size = 0x4, offset = 0x4, fixed_abs, tag = 'smem constant byte address 0x4 - core index']
  #allocation1 [shape = 'u32[144,128]{1,0:T(1,128)}', space=vmem, size = 0x12000, scoped, tag = 'internal scratch']
  %s0 = inlined_call_operand.vmem [shape: bf16[32,8], index: 0, kind: input, shape index: {}]
  %s1 = inlined_call_operand.vmem [shape: bf16[2,8,128], index: 1, kind: input, shape index: {}]
  %s2 = inlined_call_operand.hbm [shape: f32[2,32,128], index: 2, kind: output, shape index: {}]
  %s3 = sld [smem:[#allocation0]]
  $region41: #{tpu_custom_call.1} parent=0
    _
  %s5 = ssub.s32 1, %s3
  %s6 = scalar_select 0, %s5, %s3
  $region1: #{tpu_custom_call.1} parent=0
    #allocation2 [shape = 'u8[32768]{0}', space=vmem, size = 0x8000, scoped, tag = 'output window, operand 0']
    #allocation3 [shape = 's32[2]{0}', space=sflag, size = 0x8, scoped, tag = 'scoped memory for tpu_custom_call.1']
    %7 = vsyncpa [#allocation3], 0
    %s8 = scalar_lea.sflag [#allocation3], 1
    %9 = vsyncpa %s8, 0
    loop: start=0, step=1, limit=4
    $region2: #{tpu_custom_call.1} parent=1 // loop_pre_header
      _
    $region3: #{tpu_custom_call.1} parent=1 // loop_header
      %s11 = sphi 0, %s15
      %p12 = scmp.ge.s32.totalorder %s11, 4
      %s18 = sphi 0, %s30
      %s19 = sphi 0, %s26
      %s20 = sphi 0, %s18
      %s21 = sphi 0, %s19
      %s22 = sphi 0, %s20
      %s23 = sphi 0, %s21
      %s31 = sphi 0, %s31
      %s33 = sphi 0, %s31
      %s34 = sphi 0, %s33
      %s48 = sphi 0, %s34
      %s56 = sphi 0, %s58
      %s59 = sphi 0, %s56
      %s60 = sphi 0, %s59
      %s76 = sphi 0, %s60
      %s84 = sphi 0, %s86
      %s87 = sphi 0, %s84
      %s88 = sphi 0, %s87
      %s104 = sphi 0, %s88
    $region4: #{tpu_custom_call.1} parent=1 // loop_header_branch
      %14 = sbr.rel (%p12) target = $region8
    $region5: #{tpu_custom_call.1} parent=1 // loop_body
      %s16 = ssub.s32 %s11, 1
      %s17 = ssub.s32 %s11, 2
      %s24 = sadd.s32 1, %s19
      %p25 = scmp.ge.s32.totalorder %s24, 2
      %s26 = scalar_select %p25, 0, %s24
      %s27 = sadd.s32 1, %s18
      %s28 = scalar_select %p25, %s27, %s18
      %p29 = scmp.ge.s32.totalorder %s28, 1
      %s30 = scalar_select %p29, 0, %s28
      %s32 = sadd.s32 %s31, 1
      %p35 = scmp.eq.s32.totalorder %s11, 1
      %p36 = scmp.ne.s32.totalorder %s31, %s33
      %p37 = scmp.eq.s32.totalorder %s11, 0
      %p38 = por %p36, %p37
      %p39 = scmp.ne.s32.totalorder %s31, %s33
      %p40 = scmp.eq.s32.totalorder %s16, 1
      %p41 = por %p39, %p40
      %p42 = scmp.ne.s32.totalorder %s33, %s34
      %p43 = scmp.eq.s32.totalorder %s16, 0
      %p44 = por %p42, %p43
      %p45 = scmp.ne.s32.totalorder %s33, %s34
      %p46 = scmp.eq.s32.totalorder %s17, 1
      %p47 = por %p45, %p46
      %p49 = scmp.ne.s32.totalorder %s34, %s48
      %p50 = scmp.eq.s32.totalorder %s17, 0
      %p51 = por %p49, %p50
      %s52 = ssub.s32 %s19, %s26
      %s53 = ssub.s32 %s18, %s30
      %s54 = sor.u32 %s52, %s53
      %p55 = scmp.eq.s32.totalorder %s54, 0
      %s57 = sadd.s32 %s56, 1
      %s58 = scalar_select %p55, %s56, %s57
      %p61 = pneg %p55
      %p62 = scmp.eq.s32.totalorder %s11, 1
      %p63 = por %p61, %p62
      %p64 = scmp.ne.s32.totalorder %s56, %s59
      %p65 = scmp.eq.s32.totalorder %s11, 0
      %p66 = por %p64, %p65
      %p67 = scmp.ne.s32.totalorder %s56, %s59
      %p68 = scmp.eq.s32.totalorder %s16, 1
      %p69 = por %p67, %p68
      %p70 = scmp.ne.s32.totalorder %s59, %s60
      %p71 = scmp.eq.s32.totalorder %s16, 0
      %p72 = por %p70, %p71
      %p73 = scmp.ne.s32.totalorder %s59, %s60
      %p74 = scmp.eq.s32.totalorder %s17, 1
      %p75 = por %p73, %p74
      %p77 = scmp.ne.s32.totalorder %s60, %s76
      %p78 = scmp.eq.s32.totalorder %s17, 0
      %p79 = por %p77, %p78
      %s80 = ssub.s32 %s19, %s26
      %s81 = ssub.s32 %s18, %s30
      %s82 = sor.u32 %s80, %s81
      %p83 = scmp.eq.s32.totalorder %s82, 0
      %s85 = sadd.s32 %s84, 1
      %s86 = scalar_select %p83, %s84, %s85
      %p89 = pneg %p83
      %p90 = scmp.eq.s32.totalorder %s11, 1
      %p91 = por %p89, %p90
      %p92 = scmp.ne.s32.totalorder %s84, %s87
      %p93 = scmp.eq.s32.totalorder %s11, 0
      %p94 = por %p92, %p93
      %p95 = scmp.ne.s32.totalorder %s84, %s87
      %p96 = scmp.eq.s32.totalorder %s16, 1
      %p97 = por %p95, %p96
      %p98 = scmp.ne.s32.totalorder %s87, %s88
      %p99 = scmp.eq.s32.totalorder %s16, 0
      %p100 = por %p98, %p99
      %p101 = scmp.ne.s32.totalorder %s87, %s88
      %p102 = scmp.eq.s32.totalorder %s17, 1
      %p103 = por %p101, %p102
      %p105 = scmp.ne.s32.totalorder %s88, %s104
      %p106 = scmp.eq.s32.totalorder %s17, 0
      %p107 = por %p105, %p106
      %p108 = scmp.le.s32.totalorder 1, %s11
      %p109 = scmp.lt.s32.totalorder %s11, 3
      %p110 = pnand %p108, %p109
      %p111 = pneg %p110
      // Predicated region
      $region9: #{tpu_custom_call.1} parent=5 // pred_check
        _
      $region10: #{tpu_custom_call.1} parent=5 // pred_check_branch
        %113 = sbr.rel (%p110) target = $region12
      $region11: #{tpu_custom_call.1} parent=5 // pred_region
        %s114 = ssub.s32 %s11, 1
        // Predicated region
        $region13: #{tpu_custom_call.1} parent=11 // pred_check
          %p115 = pneg %p44
        $region14: #{tpu_custom_call.1} parent=11 // pred_check_branch
          %117 = sbr.rel (%p115) target = $region16
        $region15: #{tpu_custom_call.1} parent=11 // pred_region
          _
        $region16: #{tpu_custom_call.1} parent=11 // pred_fallthru
          _
      $region12: #{tpu_custom_call.1} parent=5 // pred_fallthru
        _
      %p118 = scmp.lt.s32.totalorder %s11, 2
      // Predicated region
      $region17: #{tpu_custom_call.1} parent=5 // pred_check
        %p119 = pneg %p118
      $region18: #{tpu_custom_call.1} parent=5 // pred_check_branch
        %121 = sbr.rel (%p119) target = $region20
      $region19: #{tpu_custom_call.1} parent=5 // pred_region
        // Predicated region
        $region21: #{tpu_custom_call.1} parent=19 // pred_check
          %p122 = pneg %p66
        $region22: #{tpu_custom_call.1} parent=19 // pred_check_branch
          %124 = sbr.rel (%p122) target = $region24
        $region23: #{tpu_custom_call.1} parent=19 // pred_region
          %p125 = scmp.lt.s32.totalorder %s19, 1
          %s126 = scalar_select %p125, %s19, 1
          %p127 = scmp.lt.s32.totalorder %s18, 0
          %s128 = scalar_select %p127, %s18, 0
          %s129 = sadd.s32 %s128, %s126
          %s130 = smul.addr %s129, 4
          %s131 = scalar_lea.vmem %s1, %s130
        $region24: #{tpu_custom_call.1} parent=19 // pred_fallthru
          _
      $region20: #{tpu_custom_call.1} parent=5 // pred_fallthru
        _
      %p132 = scmp.le.s32.totalorder 1, %s11
      %p133 = scmp.lt.s32.totalorder %s11, 3
      %p134 = pnand %p132, %p133
      %p135 = pneg %p134
      // Predicated region
      $region25: #{tpu_custom_call.1} parent=5 // pred_check
        _
      $region26: #{tpu_custom_call.1} parent=5 // pred_check_branch
        %137 = sbr.rel (%p134) target = $region28
      $region27: #{tpu_custom_call.1} parent=5 // pred_region
        %s138 = ssub.s32 %s11, 1
        %p139 = pneg %p44
        %p140 = pneg %p41
        %p141 = scmp.lt.s32.totalorder %s21, 1
        %s142 = scalar_select %p141, %s21, 1
        %p143 = scmp.lt.s32.totalorder %s20, 0
        %s144 = scalar_select %p143, %s20, 0
        %s145 = sadd.s32 %s144, %s142
        %s146 = smul.addr %s145, 4
        %s147 = scalar_lea.vmem %s1, %s146
        %p148 = pneg %p72
        %p149 = pneg %p69
        %p150 = pneg %p100
        %p151 = pneg %p97
        %s152 = sand.u32 %s87, 1
        %s153 = scalar_lea.sflag [#allocation3], %s152
        %s154 = sand.u32 %s87, 1
        %s155 = smul.addr %s154, 32
        %s156 = scalar_lea.vmem [#allocation2], %s155
        %p157 = scmp.lt.s32.totalorder %s21, 1
        %s158 = scalar_select %p157, %s21, 1
        %p159 = scmp.lt.s32.totalorder %s20, 0
        %s160 = scalar_select %p159, %s20, 0
        %s161 = sadd.s32 %s160, %s158
        %s162 = smul.addr %s161, 4
        %s163 = scalar_lea.vmem %s1, %s162
        %v165 = vld [vmem:[%s0] sm:$0xf]
        %v166 = vld [vmem:[%s0 + $0x4] sm:$0xf]
        %v167 = vld [vmem:[%s0 + $0x8] sm:$0xf]
        %v168 = vld [vmem:[%s0 + $0xc] sm:$0xf]
        %v169 = vld [vmem:[%s163] sm:$0xf]
        %v174 = vunpack.c.l.b16 %v165
        %v175 = vunpack.c.l.b16 %v166
        %v176 = vunpack.c.l.b16 %v167
        %v177 = vunpack.c.l.b16 %v168
        %v178 = vpack.c.b16 %v175, %v174
        %v179 = vpack.c.b16 %v177, %v176
        %vm180 = vcmask 64512
        %v182 = vsel %vm180, %v178, 0
        %v185 = vsel %vm180, %v179, 0
        %vm187 = vcmask 1043456
        %v189 = vsel %vm187, %v169, 0
        %191 = vmatprep.subr.bf16.mxu0 0
        %192 = vmatpush1.bf16.msra.mxu0 0
        %193 = vmatprep.subr.bf16.mxu0 0
        %194 = vmatpush1.bf16.msra.mxu0 0
        %195 = vmatprep.subr.bf16.mxu0 0
        %196 = vmatpush1.bf16.msra.mxu0 0
        %197 = vmatprep.subr.bf16.mxu0 0
        %198 = vmatpush1.bf16.msra.mxu0 0
        %199 = vmatprep.subr.bf16.mxu0 0
        %200 = vmatpush1.bf16.msra.mxu0 0
        %201 = vmatprep.subr.bf16.mxu0 0
        %202 = vmatpush1.bf16.msra.mxu0 0
        %203 = vmatprep.subr.bf16.mxu0 0
        %204 = vmatpush1.bf16.msra.mxu0 0
        %205 = vmatprep.subr.bf16.mxu0 0
        %206 = vmatpush1.bf16.msra.mxu0 %v189
        %207 = vmatprep.subr.bf16.mxu0 0
        %208 = vmatpush2.bf16.msra.mxu0 0
        %209 = vmatprep.subr.bf16.mxu0 0
        %210 = vmatpush2.bf16.msra.mxu0 0
        %211 = vmatprep.subr.bf16.mxu0 0
        %212 = vmatpush2.bf16.msra.mxu0 0
        %213 = vmatprep.subr.bf16.mxu0 0
        %214 = vmatpush2.bf16.msra.mxu0 0
        %215 = vmatprep.subr.bf16.mxu0 0
        %216 = vmatpush2.bf16.msra.mxu0 0
        %217 = vmatprep.subr.bf16.mxu0 0
        %218 = vmatpush2.bf16.msra.mxu0 0
        %219 = vmatprep.subr.bf16.mxu0 0
        %220 = vmatpush2.bf16.msra.mxu0 0
        %221 = vmatprep.subr.bf16.mxu0 0
        %222 = vmatpush2.bf16.msra.mxu0 0
        %223 = vmatprep.mubr.bf16.mxu0 0
        %224 = vmatmul.mubr.bf16.gmra.mxu0 %v182
        %v225 = vpop.f32.mrf.mxu0
        %v226 = vadd.f32 0.0, %v225
        %v227 = vpop.f32.mrf.mxu0
        %v228 = vpop.f32.mrf.mxu0
        %v229 = vadd.f32 0.0, %v228
        %v230 = vpop.f32.mrf.mxu0
        %231 = vmatprep.mubr.bf16.mxu0 0
        %232 = vmatmul.mubr.bf16.gmra.mxu0 %v185
        %v233 = vpop.f32.mrf.mxu0
        %v234 = vadd.f32 0.0, %v233
        %v235 = vpop.f32.mrf.mxu0
        %v236 = vpop.f32.mrf.mxu0
        %v237 = vadd.f32 0.0, %v236
        %v238 = vpop.f32.mrf.mxu0
        %239 = vdwg.mxu0
        %v240 = vmax.f32 %v226, 0.0
        %v241 = vmax.f32 %v229, 0.0
        %v242 = vmax.f32 %v234, 0.0
        %v243 = vmax.f32 %v237, 0.0
        %244 = vst [vmem:[%s156] sm:$0xff] %v240
        %245 = vst [vmem:[%s156 + $0x8] sm:$0xff] %v241
        %246 = vst [vmem:[%s156 + $0x10] sm:$0xff] %v242
        %247 = vst [vmem:[%s156 + $0x18] sm:$0xff] %v243
        %s248 = sand.u32 %s87, 1
        %s249 = scalar_lea.sflag [#allocation3], %s248
        %s250 = sand.u32 %s87, 1
        %s251 = smul.addr %s250, 32
        %s252 = scalar_lea.vmem [#allocation2], %s251
        // Predicated region
        $region29: #{tpu_custom_call.1} parent=27 // pred_check
          %p253 = pneg %p97
        $region30: #{tpu_custom_call.1} parent=27 // pred_check_branch
          %255 = sbr.rel (%p253) target = $region32
        $region31: #{tpu_custom_call.1} parent=27 // pred_region
          %s257 = ssub.s32 512, 512
          %258 = vsyncadd %s249, %s257
          %s259 = smul.addr %s21, 4
          %s260 = sadd.s32 %s20, %s259
          %s261 = smul.addr %s260, 128
          %s262 = scalar_lea.hbm %s2, %s261
          %s263 = sshll.u32 %s252, 4
          %s264 = int_to_ptr.vmem [resolvable:$true] %s263
          %269 = dma.vmem_to_hbm [thread:$0]  %s264, 512, %s262, %s249, 128, 128, 8
        $region32: #{tpu_custom_call.1} parent=27 // pred_fallthru
          _
      $region28: #{tpu_custom_call.1} parent=5 // pred_fallthru
        _
      %p270 = scmp.le.s32.totalorder 2, %s11
      // Predicated region
      $region33: #{tpu_custom_call.1} parent=5 // pred_check
        %p271 = pneg %p270
      $region34: #{tpu_custom_call.1} parent=5 // pred_check_branch
        %273 = sbr.rel (%p271) target = $region36
      $region35: #{tpu_custom_call.1} parent=5 // pred_region
        %s274 = ssub.s32 %s11, 2
        // Predicated region
        $region37: #{tpu_custom_call.1} parent=35 // pred_check
          %p275 = pneg %p103
        $region38: #{tpu_custom_call.1} parent=35 // pred_check_branch
          %277 = sbr.rel (%p275) target = $region40
        $region39: #{tpu_custom_call.1} parent=35 // pred_region
          %s278 = sand.u32 %s88, 1
          %s279 = scalar_lea.sflag [#allocation3], %s278
          %s280 = sand.u32 %s88, 1
          %s281 = smul.addr %s280, 32
          %s282 = scalar_lea.vmem [#allocation2], %s281
          %283 = dma.done %s279, 512
        $region40: #{tpu_custom_call.1} parent=35 // pred_fallthru
          _
      $region36: #{tpu_custom_call.1} parent=5 // pred_fallthru
        _
    $region6: #{tpu_custom_call.1} parent=1 // loop_footer
      %s15 = sadd.s32 1, %s11
    $region7: #{tpu_custom_call.1} parent=1 // loop_footer_branch
      %10 = sbr.rel target = $region3
    $region8: #{tpu_custom_call.1} parent=1 // loop_exit
      _
    %284 = vsyncpa [#allocation3], 1
    %s285 = scalar_lea.sflag [#allocation3], 1
    %286 = vsyncpa %s285, 1

</llo_original>
